<compile_context>
chip_gen: v5e
topology: v5e:2x2
jax: 0.10.0
libtpu: 0.0.40
codegen_flags: <defaults>
</compile_context>

<pallas_src>
import functools
import math

import jax
import jax.numpy as jnp
from jax.experimental import pallas as pl
from jax.experimental.pallas import tpu as pltpu


# ---------------------------------------------------------------------------
# Phase 1: max/mean pooling over tokens + squeeze-excite MLP -> scale (B, fold*C)
# ---------------------------------------------------------------------------
def _pool_mlp_kernel(x_ref, w1t_ref, w2t_ref, scale_ref, max_acc, sum_acc,
                     *, n_tokens, fold):
    t = pl.program_id(0)

    @pl.when(t == 0)
    def _init():
        max_acc[...] = jnp.full_like(max_acc, -jnp.inf)
        sum_acc[...] = jnp.zeros_like(sum_acc)

    x = x_ref[...].astype(jnp.float32)                       # (B, tn, C)
    # Sublane (token-axis) reductions — XLU slot, cheap next to the HBM stream.
    max_acc[...] = jnp.maximum(max_acc[...], jnp.max(x, axis=1))
    sum_acc[...] = sum_acc[...] + jnp.sum(x, axis=1)

    @pl.when(t == pl.num_programs(0) - 1)
    def _finalize():
        # Fused fc1 via linearity: max@W1 + mean@W1 == (max + mean)@W1.
        pooled = max_acc[...] + sum_acc[...] * (1.0 / n_tokens)          # (B, C)
        hidden = jnp.maximum(
            jnp.dot(pooled, w1t_ref[...], preferred_element_type=jnp.float32), 0.0)
        logits = jnp.dot(hidden, w2t_ref[...], preferred_element_type=jnp.float32)
        s = jax.nn.sigmoid(logits)                                        # (B, C)
        if fold > 1:                                                      # lane-dense scale
            s = jnp.concatenate([s] * fold, axis=-1)                      # (B, fold*C)
        scale_ref[...] = s.astype(scale_ref.dtype)


# ---------------------------------------------------------------------------
# Phase 2: lane-dense, row-tiled broadcast multiply  out = x * scale
# ---------------------------------------------------------------------------
def _apply_kernel(scale_ref, x_ref, o_ref):
    b = pl.program_id(0)
    s = scale_ref[pl.ds(b, 1), :]                            # (1, fold*C), resident block
    x = x_ref[...].astype(jnp.float32)                       # (1, tr, fold*C)
    o_ref[...] = (x * s).astype(o_ref.dtype)


def _pick_row_tile(rows, target):
    """Largest tile that exactly divides `rows`: full `rows` if small, else a
    multiple-of-8 divisor <= target (falls back to full rows)."""
    if rows <= target:
        return rows
    t = max(8, (target // 8) * 8)
    while t >= 8:
        if rows % t == 0:
            return t
        t -= 8
    return rows


def channel_attention(x, w1, w2):
    """x: (B, N, C); w1: (H, C) = fc1.weight; w2: (C, H) = fc2.weight (both bias-free)."""
    B, N, C = x.shape
    H = w1.shape[0]
    out_dtype = x.dtype
    itemsize = jnp.dtype(x.dtype).itemsize

    # Lane-dense fold: view (N, C) as (N//fold, fold*C) so the minor dim is a multiple
    # of 128 lanes. The scale is channel-periodic, so it is simply lane-tiled `fold` times.
    fold = 128 // math.gcd(C, 128)
    if fold > 1 and N % fold != 0:
        fold = 1                       # fall back to the natural (masked-lane) layout
    rows = N // fold
    Cf = fold * C
    xf = x.reshape(B, rows, Cf)

    w1t = w1.T.astype(jnp.float32)     # (C, H)
    w2t = w2.T.astype(jnp.float32)     # (H, C)

    # ---------------- phase 1: scale (B, Cf) ----------------
    pool_budget_rows = max(8, (8 * 1024 * 1024) // (2 * B * C * 4))   # double-buffered input
    tn = _pick_row_tile(N, min(512, pool_budget_rows))

    scale = pl.pallas_call(
        functools.partial(_pool_mlp_kernel, n_tokens=N, fold=fold),
        out_shape=jax.ShapeDtypeStruct((B, Cf), jnp.float32),
        grid_spec=pltpu.PrefetchScalarGridSpec(
            num_scalar_prefetch=0,
            grid=(N // tn,),
            in_specs=[
                pl.BlockSpec((B, tn, C), lambda t: (0, t, 0)),
                pl.BlockSpec((C, H), lambda t: (0, 0)),
                pl.BlockSpec((H, C), lambda t: (0, 0)),
            ],
            out_specs=pl.BlockSpec((B, Cf), lambda t: (0, 0)),
            scratch_shapes=[
                pltpu.VMEM((B, C), jnp.float32),   # running max
                pltpu.VMEM((B, C), jnp.float32),   # running sum
            ],
        ),
        compiler_params=pltpu.CompilerParams(
            dimension_semantics=("arbitrary",),        # reduction axis, resident output
            vmem_limit_bytes=32 * 1024 * 1024,
        ),
        cost_estimate=pl.CostEstimate(
            flops=2 * B * N * C + 4 * B * C * H,
            transcendentals=B * C,
            bytes_accessed=B * N * C * itemsize + B * Cf * 4 + 2 * C * H * 4),
    )(x, w1t, w2t)

    # ---------------- phase 2: out = x * scale ----------------
    apply_budget_rows = max(8, (8 * 1024 * 1024) // (4 * Cf * 4))     # 2x in + 2x out buffers
    tr = _pick_row_tile(rows, min(512, apply_budget_rows))

    out_f = pl.pallas_call(
        _apply_kernel,
        out_shape=jax.ShapeDtypeStruct((B, rows, Cf), out_dtype),
        grid_spec=pltpu.PrefetchScalarGridSpec(
            num_scalar_prefetch=0,
            grid=(B, rows // tr),
            in_specs=[
                pl.BlockSpec((B, Cf), lambda b, r: (0, 0)),       # tiny, resident
                pl.BlockSpec((1, tr, Cf), lambda b, r: (b, r, 0)),
            ],
            out_specs=pl.BlockSpec((1, tr, Cf), lambda b, r: (b, r, 0)),
        ),
        compiler_params=pltpu.CompilerParams(
            dimension_semantics=("parallel", "parallel"),  # both axes independent -> megacore
            vmem_limit_bytes=32 * 1024 * 1024,
        ),
        cost_estimate=pl.CostEstimate(
            flops=B * N * C,
            transcendentals=0,
            bytes_accessed=2 * B * N * C * itemsize + B * Cf * 4),
    )(scale, xf)

    return out_f.reshape(B, N, C)


if __name__ == "__main__":
    B, N, C, r = 2, 16, 64, 16
    H = C // r

    key = jax.random.PRNGKey(0)
    kx, k1, k2 = jax.random.split(key, 3)
    x = jax.random.normal(kx, (B, N, C), jnp.float32)
    # Deterministic init mimicking nn.Linear default: U(-1/sqrt(fan_in), 1/sqrt(fan_in))
    w1 = jax.random.uniform(k1, (H, C), jnp.float32, -1.0 / C ** 0.5, 1.0 / C ** 0.5)
    w2 = jax.random.uniform(k2, (C, H), jnp.float32, -1.0 / H ** 0.5, 1.0 / H ** 0.5)

    out = jax.jit(channel_attention)(x, w1, w2)
    jax.block_until_ready(out)

    # Pure-JAX reference (matches the PyTorch forward exactly)
    max_p = jnp.max(x, axis=1)                  # (B, C)
    avg_p = jnp.mean(x, axis=1)                 # (B, C)
    hidden = jnp.maximum(max_p @ w1.T + avg_p @ w1.T, 0.0)
    scale_ref = jax.nn.sigmoid(hidden @ w2.T)[:, None, :]
    ref = x * scale_ref

    assert out.shape == (B, N, C)
    assert jnp.allclose(out, ref, atol=1e-5, rtol=1e-5), "mismatch vs reference"
    print("KERNEL_OK")
</pallas_src>

<mosaic_0001>
module attributes {stable_mosaic.version = 11 : i64} {
  func.func @_apply_kernel(%arg0: i32, %arg1: i32, %arg2: memref<2x128xf32, #tpu.memory_space<vmem>>, %arg3: memref<1x8x128xf32, #tpu.memory_space<vmem>>, %arg4: memref<1x8x128xf32, #tpu.memory_space<vmem>>) attributes {dimension_semantics = [#tpu.dimension_semantics<parallel>, #tpu.dimension_semantics<parallel>], iteration_bounds = array<i64: 2, 1>, scalar_prefetch = 0 : i64, scratch_operands = 0 : i64, tpu.core_type = #tpu.core_type<tc>, window_params = [{pipeline_mode = #tpu.pipeline_mode<synchronous>, transform_indices = @transform_0, window_bounds = array<i64: 2, 128>}, {transform_indices = @transform_1, window_bounds = array<i64: 1, 8, 128>}, {transform_indices = @transform_2, window_bounds = array<i64: 1, 8, 128>}]} {
    %0 = arith.index_cast %arg0 : i32 to index
    %c0 = arith.constant 0 : index
    %1 = vector.load %arg2[%0, %c0] : memref<2x128xf32, #tpu.memory_space<vmem>>, vector<1x128xf32>
    %c0_0 = arith.constant 0 : index
    %c0_1 = arith.constant 0 : index
    %c0_2 = arith.constant 0 : index
    %2 = vector.load %arg3[%c0_0, %c0_1, %c0_2] : memref<1x8x128xf32, #tpu.memory_space<vmem>>, vector<1x8x128xf32>
    %3 = vector.shape_cast %1 : vector<1x128xf32> to vector<1x1x128xf32>
    %4 = vector.broadcast %3 : vector<1x1x128xf32> to vector<1x8x128xf32>
    %5 = arith.mulf %2, %4 : vector<1x8x128xf32>
    %c0_3 = arith.constant 0 : index
    %c0_4 = arith.constant 0 : index
    %c0_5 = arith.constant 0 : index
    %6 = vector.load %arg4[%c0_3, %c0_4, %c0_5] : memref<1x8x128xf32, #tpu.memory_space<vmem>>, vector<1x8x128xf32>
    tpu.vector_store %arg4[%c0_3, %c0_4, %c0_5], %5 {strides = array<i32>} : memref<1x8x128xf32, #tpu.memory_space<vmem>>, vector<1x8x128xf32>,
    return
  }
  func.func @transform_0(%arg0: i32, %arg1: i32) -> (i32, i32) {
    %c0_i32 = arith.constant 0 : i32
    %c0_i32_0 = arith.constant 0 : i32
    %c0_i32_1 = arith.constant 0 : i32
    return %c0_i32, %c0_i32_0 : i32, i32
  }
  func.func @transform_1(%arg0: i32, %arg1: i32) -> (i32, i32, i32) {
    %c0_i32 = arith.constant 0 : i32
    %c0_i32_0 = arith.constant 0 : i32
    return %arg0, %arg1, %c0_i32 : i32, i32, i32
  }
  func.func @transform_2(%arg0: i32, %arg1: i32) -> (i32, i32, i32) {
    %c0_i32 = arith.constant 0 : i32
    %c0_i32_0 = arith.constant 0 : i32
    return %arg0, %arg1, %c0_i32 : i32, i32, i32
  }
}

module attributes {stable_mosaic.version = 11 : i64} {
  func.func @_pool_mlp_kernel(%arg0: i32, %arg1: memref<2x16x64xf32, #tpu.memory_space<vmem>>, %arg2: memref<64x4xf32, #tpu.memory_space<vmem>>, %arg3: memref<4x64xf32, #tpu.memory_space<vmem>>, %arg4: memref<2x128xf32, #tpu.memory_space<vmem>>, %arg5: memref<2x64xf32, #tpu.memory_space<vmem>>, %arg6: memref<2x64xf32, #tpu.memory_space<vmem>>) attributes {dimension_semantics = [#tpu.dimension_semantics<arbitrary>], iteration_bounds = array<i64: 1>, scalar_prefetch = 0 : i64, scratch_operands = 2 : i64, tpu.core_type = #tpu.core_type<tc>, window_params = [{transform_indices = @transform_0, window_bounds = array<i64: 2, 16, 64>}, {pipeline_mode = #tpu.pipeline_mode<synchronous>, transform_indices = @transform_1, window_bounds = array<i64: 64, 4>}, {pipeline_mode = #tpu.pipeline_mode<synchronous>, transform_indices = @transform_2, window_bounds = array<i64: 4, 64>}, {pipeline_mode = #tpu.pipeline_mode<synchronous>, transform_indices = @transform_3, window_bounds = array<i64: 2, 128>}]} {
    %c0_i32 = arith.constant 0 : i32
    %0 = arith.cmpi eq, %arg0, %c0_i32 : i32
    %1 = arith.extui %0 : i1 to i32
    %c0_i32_0 = arith.constant 0 : i32
    %2 = arith.cmpi ne, %1, %c0_i32_0 : i32
    scf.if %2 {
      %cst_14 = arith.constant 0xFF800000 : f32
      %15 = vector.broadcast %cst_14 : f32 to vector<2x64xf32>
      %c0_15 = arith.constant 0 : index
      %c0_16 = arith.constant 0 : index
      %16 = vector.load %arg5[%c0_15, %c0_16] : memref<2x64xf32, #tpu.memory_space<vmem>>, vector<2x64xf32>
      tpu.vector_store %arg5[%c0_15, %c0_16], %15 {strides = array<i32>} : memref<2x64xf32, #tpu.memory_space<vmem>>, vector<2x64xf32>,
      %cst_17 = arith.constant 0.000000e+00 : f32
      %17 = vector.broadcast %cst_17 : f32 to vector<2x64xf32>
      %c0_18 = arith.constant 0 : index
      %c0_19 = arith.constant 0 : index
      %18 = vector.load %arg6[%c0_18, %c0_19] : memref<2x64xf32, #tpu.memory_space<vmem>>, vector<2x64xf32>
      tpu.vector_store %arg6[%c0_18, %c0_19], %17 {strides = array<i32>} : memref<2x64xf32, #tpu.memory_space<vmem>>, vector<2x64xf32>,
    } else {
    }
    %c0 = arith.constant 0 : index
    %c0_1 = arith.constant 0 : index
    %c0_2 = arith.constant 0 : index
    %3 = vector.load %arg1[%c0, %c0_1, %c0_2] : memref<2x16x64xf32, #tpu.memory_space<vmem>>, vector<2x16x64xf32>
    %c0_3 = arith.constant 0 : index
    %c0_4 = arith.constant 0 : index
    %4 = vector.load %arg5[%c0_3, %c0_4] : memref<2x64xf32, #tpu.memory_space<vmem>>, vector<2x64xf32>
    %cst = arith.constant dense<0xFF800000> : vector<2x64xf32>
    %5 = vector.multi_reduction <maximumf>, %3, %cst [1] : vector<2x16x64xf32> to vector<2x64xf32>
    %6 = arith.maximumf %4, %5 : vector<2x64xf32>
    %c0_5 = arith.constant 0 : index
    %c0_6 = arith.constant 0 : index
    %7 = vector.load %arg5[%c0_5, %c0_6] : memref<2x64xf32, #tpu.memory_space<vmem>>, vector<2x64xf32>
    tpu.vector_store %arg5[%c0_5, %c0_6], %6 {strides = array<i32>} : memref<2x64xf32, #tpu.memory_space<vmem>>, vector<2x64xf32>,
    %c0_7 = arith.constant 0 : index
    %c0_8 = arith.constant 0 : index
    %8 = vector.load %arg6[%c0_7, %c0_8] : memref<2x64xf32, #tpu.memory_space<vmem>>, vector<2x64xf32>
    %cst_9 = arith.constant dense<0.000000e+00> : vector<2x64xf32>
    %9 = vector.multi_reduction <add>, %3, %cst_9 [1] : vector<2x16x64xf32> to vector<2x64xf32>
    %10 = arith.addf %8, %9 : vector<2x64xf32>
    %c0_10 = arith.constant 0 : index
    %c0_11 = arith.constant 0 : index
    %11 = vector.load %arg6[%c0_10, %c0_11] : memref<2x64xf32, #tpu.memory_space<vmem>>, vector<2x64xf32>
    tpu.vector_store %arg6[%c0_10, %c0_11], %10 {strides = array<i32>} : memref<2x64xf32, #tpu.memory_space<vmem>>, vector<2x64xf32>,
    %c0_i32_12 = arith.constant 0 : i32
    %12 = arith.cmpi eq, %arg0, %c0_i32_12 : i32
    %13 = arith.extui %12 : i1 to i32
    %c0_i32_13 = arith.constant 0 : i32
    %14 = arith.cmpi ne, %13, %c0_i32_13 : i32
    scf.if %14 {
      %c0_14 = arith.constant 0 : index
      %c0_15 = arith.constant 0 : index
      %15 = vector.load %arg5[%c0_14, %c0_15] : memref<2x64xf32, #tpu.memory_space<vmem>>, vector<2x64xf32>
      %c0_16 = arith.constant 0 : index
      %c0_17 = arith.constant 0 : index
      %16 = vector.load %arg6[%c0_16, %c0_17] : memref<2x64xf32, #tpu.memory_space<vmem>>, vector<2x64xf32>
      %cst_18 = arith.constant 6.250000e-02 : f32
      %17 = vector.broadcast %cst_18 : f32 to vector<2x64xf32>
      %18 = arith.mulf %16, %17 : vector<2x64xf32>
      %19 = arith.addf %15, %18 : vector<2x64xf32>
      %c0_19 = arith.constant 0 : index
      %c0_20 = arith.constant 0 : index
      %20 = vector.load %arg2[%c0_19, %c0_20] : memref<64x4xf32, #tpu.memory_space<vmem>>, vector<64x4xf32>
      %cst_21 = arith.constant dense<0.000000e+00> : vector<2x4xf32>
      %21 = tpu.matmul %19, %20, %cst_21 {dimension_numbers = #tpu.dot_dimension_numbers<[1], [0], [0], [1], [0, 0, 1, 1], [], []>} : vector<2x64xf32>, vector<64x4xf32>, vector<2x4xf32> -> vector<2x4xf32>
      %cst_22 = arith.constant 0.000000e+00 : f32
      %22 = vector.broadcast %cst_22 : f32 to vector<2x4xf32>
      %23 = arith.maximumf %21, %22 : vector<2x4xf32>
      %c0_23 = arith.constant 0 : index
      %c0_24 = arith.constant 0 : index
      %24 = vector.load %arg3[%c0_23, %c0_24] : memref<4x64xf32, #tpu.memory_space<vmem>>, vector<4x64xf32>
      %cst_25 = arith.constant dense<0.000000e+00> : vector<2x64xf32>
      %25 = tpu.matmul %23, %24, %cst_25 {dimension_numbers = #tpu.dot_dimension_numbers<[1], [0], [0], [1], [0, 0, 1, 1], [], []>} : vector<2x4xf32>, vector<4x64xf32>, vector<2x64xf32> -> vector<2x64xf32>
      %26 = arith.negf %25 : vector<2x64xf32>
      %27 = math.exp %26 : vector<2x64xf32>
      %cst_26 = arith.constant 1.000000e+00 : f32
      %28 = vector.broadcast %cst_26 : f32 to vector<2x64xf32>
      %29 = arith.addf %28, %27 : vector<2x64xf32>
      %30 = arith.divf %28, %29 : vector<2x64xf32>
      %31 = tpu.concatenate %30, %30 in 1 : vector<2x64xf32>, vector<2x64xf32> -> vector<2x128xf32>
      %c0_27 = arith.constant 0 : index
      %c0_28 = arith.constant 0 : index
      %32 = vector.load %arg4[%c0_27, %c0_28] : memref<2x128xf32, #tpu.memory_space<vmem>>, vector<2x128xf32>
      tpu.vector_store %arg4[%c0_27, %c0_28], %31 {strides = array<i32>} : memref<2x128xf32, #tpu.memory_space<vmem>>, vector<2x128xf32>,
    } else {
    }
    return
  }
  func.func @transform_0(%arg0: i32) -> (i32, i32, i32) {
    %c0_i32 = arith.constant 0 : i32
    %c0_i32_0 = arith.constant 0 : i32
    %c0_i32_1 = arith.constant 0 : i32
    return %c0_i32, %arg0, %c0_i32_0 : i32, i32, i32
  }
  func.func @transform_1(%arg0: i32) -> (i32, i32) {
    %c0_i32 = arith.constant 0 : i32
    %c0_i32_0 = arith.constant 0 : i32
    %c0_i32_1 = arith.constant 0 : i32
    return %c0_i32, %c0_i32_0 : i32, i32
  }
  func.func @transform_2(%arg0: i32) -> (i32, i32) {
    %c0_i32 = arith.constant 0 : i32
    %c0_i32_0 = arith.constant 0 : i32
    %c0_i32_1 = arith.constant 0 : i32
    return %c0_i32, %c0_i32_0 : i32, i32
  }
  func.func @transform_3(%arg0: i32) -> (i32, i32) {
    %c0_i32 = arith.constant 0 : i32
    %c0_i32_0 = arith.constant 0 : i32
    %c0_i32_1 = arith.constant 0 : i32
    return %c0_i32, %c0_i32_0 : i32, i32
  }
}

</mosaic_0001>

<llo_original>
// kernel: channel_attention.3
$region0: #{channel_attention.3}
  #allocation0 [shape = 'u32[]', space=smem, size = 0x4, offset = 0x4, fixed_abs, tag = 'smem constant byte address 0x4 - core index']
  #allocation1 [shape = 'u32[72,128]{1,0:T(1,128)}', space=vmem, size = 0x9000, scoped, tag = 'internal scratch']
  %s0 = inlined_call_operand.vmem [shape: f32[2,128], index: 0, kind: input, shape index: {}]
  %s1 = inlined_call_operand.vmem [shape: f32[2,8,128], index: 1, kind: input, shape index: {}]
  %s2 = inlined_call_operand.vmem [shape: f32[2,8,128], index: 2, kind: output, shape index: {}]
  %s3 = sld [smem:[#allocation0]]
  $region41: #{channel_attention.3} parent=0
    _
  %s5 = ssub.s32 1, %s3
  %s6 = scalar_select 0, %s5, %s3
  loop: start=0, step=1, limit=4
  $region2: #{channel_attention.3} parent=0 // loop_pre_header
    _
  $region3: #{channel_attention.3} parent=0 // loop_header
    %s8 = sphi 0, %s12
    %p9 = scmp.ge.s32.totalorder %s8, 4
    %s15 = sphi 0, %s27
    %s16 = sphi 0, %s23
    %s17 = sphi 0, %s15
    %s18 = sphi 0, %s16
    %s19 = sphi 0, %s17
    %s20 = sphi 0, %s18
    %s28 = sphi 0, %s28
    %s30 = sphi 0, %s28
    %s31 = sphi 0, %s30
    %s45 = sphi 0, %s31
    %s53 = sphi 0, %s55
    %s56 = sphi 0, %s53
    %s57 = sphi 0, %s56
    %s73 = sphi 0, %s57
    %s81 = sphi 0, %s83
    %s84 = sphi 0, %s81
    %s85 = sphi 0, %s84
    %s101 = sphi 0, %s85
  $region4: #{channel_attention.3} parent=0 // loop_header_branch
    %11 = sbr.rel (%p9) target = $region8
  $region5: #{channel_attention.3} parent=0 // loop_body
    %s13 = ssub.s32 %s8, 1
    %s14 = ssub.s32 %s8, 2
    %s21 = sadd.s32 1, %s16
    %p22 = scmp.ge.s32.totalorder %s21, 1
    %s23 = scalar_select %p22, 0, %s21
    %s24 = sadd.s32 1, %s15
    %s25 = scalar_select %p22, %s24, %s15
    %p26 = scmp.ge.s32.totalorder %s25, 2
    %s27 = scalar_select %p26, 0, %s25
    %s29 = sadd.s32 %s28, 1
    %p32 = scmp.eq.s32.totalorder %s8, 1
    %p33 = scmp.ne.s32.totalorder %s28, %s30
    %p34 = scmp.eq.s32.totalorder %s8, 0
    %p35 = por %p33, %p34
    %p36 = scmp.ne.s32.totalorder %s28, %s30
    %p37 = scmp.eq.s32.totalorder %s13, 1
    %p38 = por %p36, %p37
    %p39 = scmp.ne.s32.totalorder %s30, %s31
    %p40 = scmp.eq.s32.totalorder %s13, 0
    %p41 = por %p39, %p40
    %p42 = scmp.ne.s32.totalorder %s30, %s31
    %p43 = scmp.eq.s32.totalorder %s14, 1
    %p44 = por %p42, %p43
    %p46 = scmp.ne.s32.totalorder %s31, %s45
    %p47 = scmp.eq.s32.totalorder %s14, 0
    %p48 = por %p46, %p47
    %s49 = ssub.s32 %s15, %s27
    %s50 = ssub.s32 %s16, %s23
    %s51 = sor.u32 %s49, %s50
    %p52 = scmp.eq.s32.totalorder %s51, 0
    %s54 = sadd.s32 %s53, 1
    %s55 = scalar_select %p52, %s53, %s54
    %p58 = pneg %p52
    %p59 = scmp.eq.s32.totalorder %s8, 1
    %p60 = por %p58, %p59
    %p61 = scmp.ne.s32.totalorder %s53, %s56
    %p62 = scmp.eq.s32.totalorder %s8, 0
    %p63 = por %p61, %p62
    %p64 = scmp.ne.s32.totalorder %s53, %s56
    %p65 = scmp.eq.s32.totalorder %s13, 1
    %p66 = por %p64, %p65
    %p67 = scmp.ne.s32.totalorder %s56, %s57
    %p68 = scmp.eq.s32.totalorder %s13, 0
    %p69 = por %p67, %p68
    %p70 = scmp.ne.s32.totalorder %s56, %s57
    %p71 = scmp.eq.s32.totalorder %s14, 1
    %p72 = por %p70, %p71
    %p74 = scmp.ne.s32.totalorder %s57, %s73
    %p75 = scmp.eq.s32.totalorder %s14, 0
    %p76 = por %p74, %p75
    %s77 = ssub.s32 %s15, %s27
    %s78 = ssub.s32 %s16, %s23
    %s79 = sor.u32 %s77, %s78
    %p80 = scmp.eq.s32.totalorder %s79, 0
    %s82 = sadd.s32 %s81, 1
    %s83 = scalar_select %p80, %s81, %s82
    %p86 = pneg %p80
    %p87 = scmp.eq.s32.totalorder %s8, 1
    %p88 = por %p86, %p87
    %p89 = scmp.ne.s32.totalorder %s81, %s84
    %p90 = scmp.eq.s32.totalorder %s8, 0
    %p91 = por %p89, %p90
    %p92 = scmp.ne.s32.totalorder %s81, %s84
    %p93 = scmp.eq.s32.totalorder %s13, 1
    %p94 = por %p92, %p93
    %p95 = scmp.ne.s32.totalorder %s84, %s85
    %p96 = scmp.eq.s32.totalorder %s13, 0
    %p97 = por %p95, %p96
    %p98 = scmp.ne.s32.totalorder %s84, %s85
    %p99 = scmp.eq.s32.totalorder %s14, 1
    %p100 = por %p98, %p99
    %p102 = scmp.ne.s32.totalorder %s85, %s101
    %p103 = scmp.eq.s32.totalorder %s14, 0
    %p104 = por %p102, %p103
    %p105 = scmp.le.s32.totalorder 1, %s8
    %p106 = scmp.lt.s32.totalorder %s8, 3
    %p107 = pnand %p105, %p106
    %p108 = pneg %p107
    // Predicated region
    $region9: #{channel_attention.3} parent=5 // pred_check
      _
    $region10: #{channel_attention.3} parent=5 // pred_check_branch
      %110 = sbr.rel (%p107) target = $region12
    $region11: #{channel_attention.3} parent=5 // pred_region
      %s111 = ssub.s32 %s8, 1
      // Predicated region
      $region13: #{channel_attention.3} parent=11 // pred_check
        %p112 = pneg %p41
      $region14: #{channel_attention.3} parent=11 // pred_check_branch
        %114 = sbr.rel (%p112) target = $region16
      $region15: #{channel_attention.3} parent=11 // pred_region
        _
      $region16: #{channel_attention.3} parent=11 // pred_fallthru
        _
    $region12: #{channel_attention.3} parent=5 // pred_fallthru
      _
    %p115 = scmp.lt.s32.totalorder %s8, 2
    // Predicated region
    $region17: #{channel_attention.3} parent=5 // pred_check
      %p116 = pneg %p115
    $region18: #{channel_attention.3} parent=5 // pred_check_branch
      %118 = sbr.rel (%p116) target = $region20
    $region19: #{channel_attention.3} parent=5 // pred_region
      // Predicated region
      $region21: #{channel_attention.3} parent=19 // pred_check
        %p119 = pneg %p63
      $region22: #{channel_attention.3} parent=19 // pred_check_branch
        %121 = sbr.rel (%p119) target = $region24
      $region23: #{channel_attention.3} parent=19 // pred_region
        %p122 = scmp.lt.s32.totalorder %s15, 1
        %s123 = scalar_select %p122, %s15, 1
        %p124 = scmp.lt.s32.totalorder %s16, 0
        %s125 = scalar_select %p124, %s16, 0
        %s126 = sadd.s32 %s125, %s123
        %s127 = smul.addr %s126, 8
        %s128 = scalar_lea.vmem %s1, %s127
      $region24: #{channel_attention.3} parent=19 // pred_fallthru
        _
    $region20: #{channel_attention.3} parent=5 // pred_fallthru
      _
    %p129 = scmp.le.s32.totalorder 1, %s8
    %p130 = scmp.lt.s32.totalorder %s8, 3
    %p131 = pnand %p129, %p130
    %p132 = pneg %p131
    // Predicated region
    $region25: #{channel_attention.3} parent=5 // pred_check
      _
    $region26: #{channel_attention.3} parent=5 // pred_check_branch
      %134 = sbr.rel (%p131) target = $region28
    $region27: #{channel_attention.3} parent=5 // pred_region
      %s135 = ssub.s32 %s8, 1
      %p136 = pneg %p41
      %p137 = pneg %p38
      %p138 = scmp.lt.s32.totalorder %s17, 1
      %s139 = scalar_select %p138, %s17, 1
      %p140 = scmp.lt.s32.totalorder %s18, 0
      %s141 = scalar_select %p140, %s18, 0
      %s142 = sadd.s32 %s141, %s139
      %s143 = smul.addr %s142, 8
      %s144 = scalar_lea.vmem %s1, %s143
      %p145 = pneg %p69
      %p146 = pneg %p66
      %p147 = pneg %p97
      %p148 = pneg %p94
      %p149 = scmp.lt.s32.totalorder %s17, 1
      %s150 = scalar_select %p149, %s17, 1
      %p151 = scmp.lt.s32.totalorder %s18, 0
      %s152 = scalar_select %p151, %s18, 0
      %s153 = sadd.s32 %s152, %s150
      %s154 = smul.addr %s153, 8
      %s155 = scalar_lea.vmem %s2, %s154
      %p156 = scmp.lt.s32.totalorder %s17, 1
      %s157 = scalar_select %p156, %s17, 1
      %p158 = scmp.lt.s32.totalorder %s18, 0
      %s159 = scalar_select %p158, %s18, 0
      %s160 = sadd.s32 %s159, %s157
      %s161 = smul.addr %s160, 8
      %s162 = scalar_lea.vmem %s1, %s161
      %p163 = scmp.lt.s32.totalorder %s17, 1
      %s164 = scalar_select %p163, %s17, 1
      %p165 = scmp.lt.s32.totalorder %s18, 0
      %s166 = scalar_select %p165, %s18, 0
      %s167 = sadd.s32 %s166, %s164
      %s168 = smul.addr %s167, 8
      %s169 = scalar_lea.vmem %s2, %s168
      %s170 = scalar_lea.vmem %s0, %s17
      %v171 = vld [vmem:[%s170] sm:$0x1]
      %v172 = vld [vmem:[%s162] sm:$0xff]
      %v173 = vperm.slane %v171, 0
      %v174 = vmul.f32 %v172, %v173
      %175 = vst [vmem:[%s169] sm:$0xff] %v174
      %p176 = scmp.lt.s32.totalorder %s17, 1
      %s177 = scalar_select %p176, %s17, 1
      %p178 = scmp.lt.s32.totalorder %s18, 0
      %s179 = scalar_select %p178, %s18, 0
      %s180 = sadd.s32 %s179, %s177
      %s181 = smul.addr %s180, 8
      %s182 = scalar_lea.vmem %s2, %s181
      // Predicated region
      $region29: #{channel_attention.3} parent=27 // pred_check
        %p183 = pneg %p94
      $region30: #{channel_attention.3} parent=27 // pred_check_branch
        %185 = sbr.rel (%p183) target = $region32
      $region31: #{channel_attention.3} parent=27 // pred_region
        _
      $region32: #{channel_attention.3} parent=27 // pred_fallthru
        _
    $region28: #{channel_attention.3} parent=5 // pred_fallthru
      _
    %p186 = scmp.le.s32.totalorder 2, %s8
    // Predicated region
    $region33: #{channel_attention.3} parent=5 // pred_check
      %p187 = pneg %p186
    $region34: #{channel_attention.3} parent=5 // pred_check_branch
      %189 = sbr.rel (%p187) target = $region36
    $region35: #{channel_attention.3} parent=5 // pred_region
      %s190 = ssub.s32 %s8, 2
      // Predicated region
      $region37: #{channel_attention.3} parent=35 // pred_check
        %p191 = pneg %p100
      $region38: #{channel_attention.3} parent=35 // pred_check_branch
        %193 = sbr.rel (%p191) target = $region40
      $region39: #{channel_attention.3} parent=35 // pred_region
        %p194 = scmp.lt.s32.totalorder %s19, 1
        %s195 = scalar_select %p194, %s19, 1
        %p196 = scmp.lt.s32.totalorder %s20, 0
        %s197 = scalar_select %p196, %s20, 0
        %s198 = sadd.s32 %s197, %s195
        %s199 = smul.addr %s198, 8
        %s200 = scalar_lea.vmem %s2, %s199
      $region40: #{channel_attention.3} parent=35 // pred_fallthru
        _
    $region36: #{channel_attention.3} parent=5 // pred_fallthru
      _
  $region6: #{channel_attention.3} parent=0 // loop_footer
    %s12 = sadd.s32 1, %s8
  $region7: #{channel_attention.3} parent=0 // loop_footer_branch
    %7 = sbr.rel target = $region3
  $region8: #{channel_attention.3} parent=0 // loop_exit
    _

// kernel: channel_attention.2
$region0: #{channel_attention.2}
  #allocation0 [shape = 'u32[]', space=smem, size = 0x4, offset = 0x4, fixed_abs, tag = 'smem constant byte address 0x4 - core index']
  #allocation1 [shape = 'u32[72,128]{1,0:T(1,128)}', space=vmem, size = 0x9000, scoped, tag = 'internal scratch']
  #allocation2 [shape = 'f32[2,64]{1,0:T(2,128)}', space=vmem, size = 0x400, scoped, tag = 'scratch operand']
  #allocation3 [shape = 'f32[2,64]{1,0:T(2,128)}', space=vmem, size = 0x400, scoped, tag = 'scratch operand']
  %s0 = inlined_call_operand.vmem [shape: f32[2,16,64], index: 0, kind: input, shape index: {}]
  %s1 = inlined_call_operand.vmem [shape: f32[64,4], index: 1, kind: input, shape index: {}]
  %s2 = inlined_call_operand.vmem [shape: f32[4,64], index: 2, kind: input, shape index: {}]
  %s3 = inlined_call_operand.vmem [shape: f32[2,128], index: 3, kind: output, shape index: {}]
  %s4 = sld [smem:[#allocation0]]
  $region30: #{channel_attention.2} parent=0
    _
  %s6 = ssub.s32 1, %s4
  %s7 = scalar_select 0, %s6, %s4
  // Predicated region
  $region2: #{channel_attention.2} parent=0 // pred_check
    _
  $region3: #{channel_attention.2} parent=0 // pred_check_branch
    %9 = sbr.rel (0) target = $region5
  $region4: #{channel_attention.2} parent=0 // pred_region
    _
  $region5: #{channel_attention.2} parent=0 // pred_fallthru
    _
  // Predicated region
  $region6: #{channel_attention.2} parent=0 // pred_check
    _
  $region7: #{channel_attention.2} parent=0 // pred_check_branch
    %11 = sbr.rel (0) target = $region9
  $region8: #{channel_attention.2} parent=0 // pred_region
    _
  $region9: #{channel_attention.2} parent=0 // pred_fallthru
    _
  // Predicated region
  $region10: #{channel_attention.2} parent=0 // pred_check
    _
  $region11: #{channel_attention.2} parent=0 // pred_check_branch
    %13 = sbr.rel (0) target = $region13
  $region12: #{channel_attention.2} parent=0 // pred_region
    _
  $region13: #{channel_attention.2} parent=0 // pred_fallthru
    _
  %p14 = scmp.eq.s32.totalorder 0, 0
  // Predicated region
  $region14: #{channel_attention.2} parent=0 // pred_check
    %p15 = pneg %p14
  $region15: #{channel_attention.2} parent=0 // pred_check_branch
    %17 = sbr.rel (%p15) target = $region17
  $region16: #{channel_attention.2} parent=0 // pred_region
    %vm18 = vcmask 517120
    %19 = vst.msk [vmem:[#allocation2] sm:$0x3] %vm18, -inf
    %20 = vst.msk [vmem:[#allocation3] sm:$0x3] %vm18, 0.0
  $region17: #{channel_attention.2} parent=0 // pred_fallthru
    _
  %v21 = vld [vmem:[%s0] sm:$0xff]
  %v22 = vld [vmem:[%s0 + $0x8] sm:$0xff]
  %v23 = vld [vmem:[%s0 + $0x10] sm:$0xff]
  %v24 = vld [vmem:[%s0 + $0x18] sm:$0xff]
  %v25 = vld [vmem:[#allocation2] sm:$0x3]
  %vm26 = vcmask 523264
  %v27 = vsel %vm26, %v21, -inf
  %v28 = vsel %vm26, %v22, -inf
  %v29 = vmax.f32 %v27, %v28
  %v30 = vrot.slane %v29, 4
  %v31 = vmax.f32 %v29, %v30
  %v32 = vrot.slane %v31, 2
  %v33 = vmax.f32 %v31, %v32
  %v34 = vrot.slane %v33, 1
  %v35 = vmax.f32 %v33, %v34
  %v36 = vsel %vm26, %v23, -inf
  %v37 = vsel %vm26, %v24, -inf
  %v38 = vmax.f32 %v36, %v37
  %v39 = vrot.slane %v38, 4
  %v40 = vmax.f32 %v38, %v39
  %v41 = vrot.slane %v40, 2
  %v42 = vmax.f32 %v40, %v41
  %v43 = vrot.slane %v42, 1
  %v44 = vmax.f32 %v42, %v43
  %vm47 = vcmask 1041409
  %v48 = vsel %vm47, %v44, %v35
  %v50 = vmax.f32 %v25, %v48
  %vm51 = vcmask 517120
  %52 = vst.msk [vmem:[#allocation2] sm:$0x3] %vm51, %v50
  %v53 = vld [vmem:[#allocation3] sm:$0x3]
  %v54 = vsel %vm26, %v21, 0.0
  %v55 = vsel %vm26, %v22, 0.0
  %v56 = vadd.f32 %v54, %v55
  %v57 = vrot.slane %v56, 4
  %v58 = vadd.f32 %v56, %v57
  %v59 = vrot.slane %v58, 2
  %v60 = vadd.f32 %v58, %v59
  %v61 = vrot.slane %v60, 1
  %v62 = vadd.f32 %v60, %v61
  %v63 = vsel %vm26, %v23, 0.0
  %v64 = vsel %vm26, %v24, 0.0
  %v65 = vadd.f32 %v63, %v64
  %v66 = vrot.slane %v65, 4
  %v67 = vadd.f32 %v65, %v66
  %v68 = vrot.slane %v67, 2
  %v69 = vadd.f32 %v67, %v68
  %v70 = vrot.slane %v69, 1
  %v71 = vadd.f32 %v69, %v70
  %v74 = vsel %vm47, %v71, %v62
  %v76 = vadd.f32 %v53, %v74
  %77 = vst.msk [vmem:[#allocation3] sm:$0x3] %vm51, %v76
  // Predicated region
  $region18: #{channel_attention.2} parent=0 // pred_check
    %p78 = pneg %p14
  $region19: #{channel_attention.2} parent=0 // pred_check_branch
    %80 = sbr.rel (%p78) target = $region21
  $region20: #{channel_attention.2} parent=0 // pred_region
    %v81 = vld [vmem:[#allocation2] sm:$0x3]
    %v82 = vld [vmem:[#allocation3] sm:$0x3]
    %v83 = vmul.f32 %v82, 0.0625
    %v84 = vadd.f32 %v81, %v83
    %v85 = vld [vmem:[%s1] sm:$0xff]
    %v86 = vld [vmem:[%s1 + $0x8] sm:$0xff]
    %v87 = vld [vmem:[%s1 + $0x10] sm:$0xff]
    %v88 = vld [vmem:[%s1 + $0x18] sm:$0xff]
    %v89 = vld [vmem:[%s1 + $0x20] sm:$0xff]
    %v90 = vld [vmem:[%s1 + $0x28] sm:$0xff]
    %v91 = vld [vmem:[%s1 + $0x30] sm:$0xff]
    %v92 = vld [vmem:[%s1 + $0x38] sm:$0xff]
    %v94 = vsel %vm26, %v84, 0
    %96 = vmatpush.msra.mxu0 0.0
    %97 = vmatpush.msra.mxu0 0.0
    %98 = vmatpush.msra.mxu0 0.0
    %99 = vmatpush.msra.mxu0 0.0
    %100 = vmatpush.msra.mxu0 0.0
    %101 = vmatpush.msra.mxu0 0.0
    %102 = vmatpush.msra.mxu0 0.0
    %103 = vmatpush.msra.mxu0 0.0
    %104 = vmatpush.msra.mxu0 %v92
    %105 = vmatpush.msra.mxu0 %v91
    %106 = vmatpush.msra.mxu0 %v90
    %107 = vmatpush.msra.mxu0 %v89
    %108 = vmatpush.msra.mxu0 %v88
    %109 = vmatpush.msra.mxu0 %v87
    %110 = vmatpush.msra.mxu0 %v86
    %111 = vmatpush.msra.mxu0 %v85
    %112 = vmatmul.f32.gmra.mxu0 %v94
    %v113 = vpop.f32.mrf.mxu0
    %v114 = vadd.f32 0.0, %v113
    %115 = vdwg.mxu0
    %v116 = vmax.f32 %v114, 0.0
    %v117 = vld [vmem:[%s2] sm:$0xf]
    %vm118 = vcmask 31744
    %v120 = vsel %vm118, %v116, 0
    %vm122 = vcmask 1043456
    %v124 = vsel %vm122, %v117, 0
    %126 = vmatpush.msra.mxu0 0.0
    %127 = vmatpush.msra.mxu0 0.0
    %128 = vmatpush.msra.mxu0 0.0
    %129 = vmatpush.msra.mxu0 0.0
    %130 = vmatpush.msra.mxu0 0.0
    %131 = vmatpush.msra.mxu0 0.0
    %132 = vmatpush.msra.mxu0 0.0
    %133 = vmatpush.msra.mxu0 0.0
    %134 = vmatpush.msra.mxu0 0.0
    %135 = vmatpush.msra.mxu0 0.0
    %136 = vmatpush.msra.mxu0 0.0
    %137 = vmatpush.msra.mxu0 0.0
    %138 = vmatpush.msra.mxu0 0.0
    %139 = vmatpush.msra.mxu0 0.0
    %140 = vmatpush.msra.mxu0 0.0
    %141 = vmatpush.msra.mxu0 %v124
    %142 = vmatmul.f32.gmra.mxu0 %v120
    %v143 = vpop.f32.mrf.mxu0
    %v144 = vadd.f32 0.0, %v143
    %145 = vdwg.mxu0
    %v146 = vxor.u32 %v144, 2147483648
    %v147 = vmul.f32 %v146, 1.442695
    %v148 = vpow.pop %v147
    %v149 = vadd.f32 %v148, 1.0
    %v150 = vrcp.pop %v149
    %v151 = vmul.f32 %v149, %v150
    %v152 = vsub.f32 1.0, %v151
    %v153 = vmul.f32 %v150, %v152
    %v154 = vadd.f32 %v150, %v153
    %vm155 = vweird.f32 %v149
    %vm156 = vweird.f32 %v150
    %vm157 = vmor %vm155, %vm156
    %v158 = vsel %vm157, %v150, %v154
    %v159 = vand.u32 2147483647, %v149
    %vm160 = vcmp.eq.f32.partialorder %v159, 8.507059e+37
    %v161 = vand.u32 %v149, 2147483648
    %v162 = vor.u32 1.1754944e-38, %v161
    %v163 = vsel %vm160, %v162, %v158
    %v164 = vmul.f32 1.0, %v163
    %166 = vrot.lane.b32.xlu0 %v164, 64
    %v167 = vpop.permute.xlu0 %166
    %v169 = vsel %vm26, %v164, %v167
    %170 = vst [vmem:[%s3] sm:$0x3] %v169
  $region21: #{channel_attention.2} parent=0 // pred_fallthru
    _
  // Predicated region
  $region22: #{channel_attention.2} parent=0 // pred_check
    _
  $region23: #{channel_attention.2} parent=0 // pred_check_branch
    %172 = sbr.rel (0) target = $region25
  $region24: #{channel_attention.2} parent=0 // pred_region
    _
  $region25: #{channel_attention.2} parent=0 // pred_fallthru
    _
  // Predicated region
  $region26: #{channel_attention.2} parent=0 // pred_check
    _
  $region27: #{channel_attention.2} parent=0 // pred_check_branch
    %174 = sbr.rel (0) target = $region29
  $region28: #{channel_attention.2} parent=0 // pred_region
    _
  $region29: #{channel_attention.2} parent=0 // pred_fallthru
    _

</llo_original>
